<compile_context>
chip_gen: v5e
topology: v5e:2x2
jax: 0.10.0
libtpu: 0.0.40
codegen_flags: <defaults>
</compile_context>

<pallas_src>
import jax
import jax.numpy as jnp
from jax.experimental import pallas as pl
from jax.experimental.pallas import tpu as pltpu


# ----------------------------------------------------------------------------
# Kernel 1: grouped-GEMM routed experts over the sorted/padded dispatch buffer.
# Grid = (n_dispatch_tiles,). Each tile belongs to exactly one expert (groups are
# tile-aligned by construction); padding rows are zeros and their outputs are
# never gathered back, so no in-kernel masking is needed.
# ----------------------------------------------------------------------------
def grouped_expert_kernel(tile_expert_smem,        # SMEM (n_tiles,) int32 — used by index_maps only
                          x_ref,                   # (TM, H)  bf16 dispatched tokens
                          wg_ref, wu_ref, wd_ref,  # (1,H,Ii), (1,H,Ii), (1,Ii,H) bf16
                          o_ref):                  # (TM, H)  bf16
    del tile_expert_smem
    x = x_ref[...]
    g = jnp.dot(x, wg_ref[0], preferred_element_type=jnp.float32)
    u = jnp.dot(x, wu_ref[0], preferred_element_type=jnp.float32)
    h = (g * jax.nn.sigmoid(g)) * u                          # silu(g) * u, f32 elementwise
    o_ref[...] = jnp.dot(h.astype(jnp.bfloat16), wd_ref[0],
                         preferred_element_type=jnp.float32).astype(o_ref.dtype)


# ----------------------------------------------------------------------------
# Kernel 2: shared SwiGLU expert (dense, with biases) over token tiles.
# ----------------------------------------------------------------------------
def shared_expert_kernel(x_ref, gw_ref, gb_ref, uw_ref, ub_ref, dw_ref, db_ref, o_ref):
    x = x_ref[...]
    g = jnp.dot(x, gw_ref[...], preferred_element_type=jnp.float32) + gb_ref[...]
    u = jnp.dot(x, uw_ref[...], preferred_element_type=jnp.float32) + ub_ref[...]
    h = (g * jax.nn.sigmoid(g)) * u
    o_ref[...] = (jnp.dot(h.astype(jnp.bfloat16), dw_ref[...],
                          preferred_element_type=jnp.float32) + db_ref[...]).astype(o_ref.dtype)


# ----------------------------------------------------------------------------
# Wrapper
# ----------------------------------------------------------------------------
def sparse_mlp_forward(x, params):
    B, S, H = x.shape
    T = B * S
    E = params["wr"].shape[1]
    Ii = params["wg"].shape[2]
    Is = params["sgw"].shape[1]
    top_k = params["top_k"]
    bf16 = jnp.bfloat16

    x2 = x.reshape(T, H)                       # native dtype (no forced f32 round-trip)
    x2b = x2.astype(bf16)                      # single cast feeding the MXU kernels

    # --- router + top-k (plain XLA; tiny matmul, data-dependent top-k/sort) ---
    logits = jnp.dot(x2, params["wr"].astype(x2.dtype))
    probs = jax.nn.softmax(logits.astype(jnp.float32), axis=-1)
    topk_w, topk_idx = jax.lax.top_k(probs, top_k)
    topk_w = topk_w / jnp.sum(topk_w, axis=-1, keepdims=True)

    # --- grouped-GEMM dispatch: sort (token, slot) pairs by expert, pad each
    #     expert group to a tile boundary inside a static-size buffer ---
    D = T * top_k                                           # dispatched rows
    expert_flat = topk_idx.reshape(D)
    token_flat = jnp.repeat(jnp.arange(T, dtype=jnp.int32), top_k)
    weight_flat = topk_w.reshape(D)

    order = jnp.argsort(expert_flat)
    sorted_expert = expert_flat[order]
    sorted_token = token_flat[order]
    sorted_weight = weight_flat[order]

    # Token tile for the grouped grid (see header for per-generation guidance).
    TM = 128 if D >= 256 else 8

    counts = jnp.zeros((E,), jnp.int32).at[expert_flat].add(1)      # tokens per expert
    padded_counts = ((counts + TM - 1) // TM) * TM                  # tile-aligned
    padded_ends = jnp.cumsum(padded_counts)
    padded_starts = padded_ends - padded_counts
    sorted_starts = jnp.cumsum(counts) - counts

    # Static upper bound on the padded dispatch size (multiple of TM).
    P = TM * ((D + E * (TM - 1)) // TM)
    n_tiles = P // TM                                               # >= 2 at the toy config

    rank = jnp.arange(D, dtype=jnp.int32) - sorted_starts[sorted_expert]
    dest = padded_starts[sorted_expert] + rank                      # row in padded buffer

    x_disp = jnp.zeros((P, H), bf16).at[dest].set(x2b[sorted_token])

    # Per-tile expert id (1-D int32 -> cheap SMEM scalar prefetch; drives the
    # weight index_maps so inactive experts cost neither FLOPs nor DMA).
    tile_rows = jnp.arange(n_tiles, dtype=jnp.int32) * TM
    tile_expert = jnp.sum(tile_rows[:, None] >= padded_ends[None, :], axis=1)
    tile_expert = jnp.minimum(tile_expert, E - 1).astype(jnp.int32)  # clamp phantom tiles

    # bf16 MXU weights (cast once per call).
    wg = params["wg"].astype(bf16)
    wu = params["wu"].astype(bf16)
    wd = params["wd"].astype(bf16)
    sgw = params["sgw"].astype(bf16)
    suw = params["suw"].astype(bf16)
    sdw = params["sdw"].astype(bf16)
    sgb, sub, sdb = params["sgb"], params["sub"], params["sdb"]      # f32 biases

    # --- routed experts: grouped GEMM over dispatch tiles ---
    grouped_out = pl.pallas_call(
        grouped_expert_kernel,
        out_shape=jax.ShapeDtypeStruct((P, H), bf16),
        grid_spec=pltpu.PrefetchScalarGridSpec(
            num_scalar_prefetch=1,
            grid=(n_tiles,),
            in_specs=[
                pl.BlockSpec((TM, H),    lambda i, te: (i, 0)),          # dispatched tokens
                pl.BlockSpec((1, H, Ii), lambda i, te: (te[i], 0, 0)),   # gate W of this tile's expert
                pl.BlockSpec((1, H, Ii), lambda i, te: (te[i], 0, 0)),   # up   W
                pl.BlockSpec((1, Ii, H), lambda i, te: (te[i], 0, 0)),   # down W
            ],
            out_specs=pl.BlockSpec((TM, H), lambda i, te: (i, 0)),
        ),
        compiler_params=pltpu.CompilerParams(
            dimension_semantics=("parallel",),
            vmem_limit_bytes=32 * 1024 * 1024),
    )(tile_expert, x_disp, wg, wu, wd)

    # --- shared expert: dense biased SwiGLU over token tiles ---
    TMS = next((t for t in (256, 128, 64, 32, 16, 8) if T % t == 0 and T // t >= 2), T)
    shared_w_spec = lambda shp: pl.BlockSpec(shp, lambda i: (0, 0),
                                             pipeline_mode=pl.Buffered(1))  # resident, single-buffered
    shared_out = pl.pallas_call(
        shared_expert_kernel,
        out_shape=jax.ShapeDtypeStruct((T, H), bf16),
        grid_spec=pltpu.PrefetchScalarGridSpec(
            num_scalar_prefetch=0,
            grid=(T // TMS,),
            in_specs=[
                pl.BlockSpec((TMS, H), lambda i: (i, 0)),
                shared_w_spec((H, Is)), shared_w_spec((1, Is)),
                shared_w_spec((H, Is)), shared_w_spec((1, Is)),
                shared_w_spec((Is, H)), shared_w_spec((1, H)),
            ],
            out_specs=pl.BlockSpec((TMS, H), lambda i: (i, 0)),
        ),
        compiler_params=pltpu.CompilerParams(
            dimension_semantics=("parallel",),
            vmem_limit_bytes=32 * 1024 * 1024),
    )(x2b, sgw, sgb, suw, sub, sdw, sdb)

    # --- un-permute + top-k-weighted combine (f32 accumulation) + shared add ---
    y_sorted = grouped_out[dest].astype(jnp.float32)                 # (D, H)
    moe = jnp.zeros((T, H), jnp.float32).at[sorted_token].add(
        sorted_weight[:, None] * y_sorted)
    out2 = moe + shared_out.astype(jnp.float32)
    return out2.reshape(B, S, H).astype(x.dtype)


# ----------------------------------------------------------------------------
# Pure-JAX reference (fp32 everywhere)
# ----------------------------------------------------------------------------
def reference(x, params):
    B, S, H = x.shape
    x2 = x.reshape(-1, H).astype(jnp.float32)
    E = params["wr"].shape[1]
    logits = x2 @ params["wr"]
    probs = jax.nn.softmax(logits, axis=-1)
    topk_w, topk_idx = jax.lax.top_k(probs, params["top_k"])
    topk_w = topk_w / jnp.sum(topk_w, axis=-1, keepdims=True)
    cw = jnp.sum(jax.nn.one_hot(topk_idx, E) * topk_w[..., None], axis=1)

    moe = jnp.zeros_like(x2)
    for e in range(E):
        g = x2 @ params["wg"][e]
        u = x2 @ params["wu"][e]
        moe = moe + cw[:, e:e + 1] * ((jax.nn.silu(g) * u) @ params["wd"][e])

    g = x2 @ params["sgw"] + params["sgb"]
    u = x2 @ params["suw"] + params["sub"]
    shared = (jax.nn.silu(g) * u) @ params["sdw"] + params["sdb"]
    return (moe + shared).reshape(B, S, H)


# ----------------------------------------------------------------------------
# main
# ----------------------------------------------------------------------------
if __name__ == "__main__":
    # config: hidden_size=32, intermediate_size=64, num_experts=4, top_k=2,
    # num_shared_expert=1 (shared intermediate = 64), ep_size=1.
    B, S, H = 2, 8, 32
    E, Ii, top_k, n_shared = 4, 64, 2, 1
    Is = Ii * n_shared

    key = jax.random.PRNGKey(0)
    ks = jax.random.split(key, 13)
    init = lambda k, shape: 0.02 * jax.random.normal(k, shape, dtype=jnp.float32)

    params = {
        "top_k": top_k,
        "wr":  init(ks[0], (H, E)),          # router (no bias)
        "wg":  init(ks[1], (E, H, Ii)),      # expert gate_proj (no bias)
        "wu":  init(ks[2], (E, H, Ii)),      # expert up_proj   (no bias)
        "wd":  init(ks[3], (E, Ii, H)),      # expert down_proj (no bias)
        "sgw": init(ks[4], (H, Is)),         # shared gate_proj
        "sgb": init(ks[5], (1, Is)),
        "suw": init(ks[6], (H, Is)),         # shared up_proj
        "sub": init(ks[7], (1, Is)),
        "sdw": init(ks[8], (Is, H)),         # shared down_proj
        "sdb": init(ks[9], (1, H)),
    }

    x = jax.random.normal(ks[10], (B, S, H), dtype=jnp.float32)

    out = jax.block_until_ready(sparse_mlp_forward(x, params))
    ref = jax.block_until_ready(reference(x, params))

    assert out.shape == (B, S, H) and out.dtype == jnp.float32
    # bf16 MXU inputs / bf16 kernel outputs (f32 accumulation) -> relaxed tolerance
    # vs the fp32 reference.
    assert jnp.allclose(out, ref, rtol=1e-2, atol=1e-3), (
        f"max abs err {jnp.max(jnp.abs(out - ref))}")
    print("KERNEL_OK")
</pallas_src>

<mosaic_0001>
module attributes {stable_mosaic.version = 11 : i64} {
  func.func @grouped_expert_kernel(%arg0: i32, %arg1: memref<7xi32, #tpu.memory_space<smem>>, %arg2: memref<8x32xbf16, #tpu.memory_space<vmem>>, %arg3: memref<1x32x64xbf16, #tpu.memory_space<vmem>>, %arg4: memref<1x32x64xbf16, #tpu.memory_space<vmem>>, %arg5: memref<1x64x32xbf16, #tpu.memory_space<vmem>>, %arg6: memref<8x32xbf16, #tpu.memory_space<vmem>>) attributes {dimension_semantics = [#tpu.dimension_semantics<parallel>], iteration_bounds = array<i64: 7>, scalar_prefetch = 1 : i64, scratch_operands = 0 : i64, tpu.core_type = #tpu.core_type<tc>, window_params = [{transform_indices = @transform_0, window_bounds = array<i64: 8, 32>}, {transform_indices = @transform_1, window_bounds = array<i64: 1, 32, 64>}, {transform_indices = @transform_2, window_bounds = array<i64: 1, 32, 64>}, {transform_indices = @transform_3, window_bounds = array<i64: 1, 64, 32>}, {transform_indices = @transform_4, window_bounds = array<i64: 8, 32>}]} {
    %c0 = arith.constant 0 : index
    %c0_0 = arith.constant 0 : index
    %0 = vector.load %arg2[%c0, %c0_0] : memref<8x32xbf16, #tpu.memory_space<vmem>>, vector<8x32xbf16>
    %c0_1 = arith.constant 0 : index
    %c0_2 = arith.constant 0 : index
    %c0_3 = arith.constant 0 : index
    %1 = vector.load %arg3[%c0_1, %c0_2, %c0_3] : memref<1x32x64xbf16, #tpu.memory_space<vmem>>, vector<1x32x64xbf16>
    %2 = vector.shape_cast %1 : vector<1x32x64xbf16> to vector<32x64xbf16>
    %cst = arith.constant dense<0.000000e+00> : vector<8x64xf32>
    %3 = tpu.matmul %0, %2, %cst {dimension_numbers = #tpu.dot_dimension_numbers<[1], [0], [0], [1], [0, 0, 1, 1], [], []>} : vector<8x32xbf16>, vector<32x64xbf16>, vector<8x64xf32> -> vector<8x64xf32>
    %c0_4 = arith.constant 0 : index
    %c0_5 = arith.constant 0 : index
    %c0_6 = arith.constant 0 : index
    %4 = vector.load %arg4[%c0_4, %c0_5, %c0_6] : memref<1x32x64xbf16, #tpu.memory_space<vmem>>, vector<1x32x64xbf16>
    %5 = vector.shape_cast %4 : vector<1x32x64xbf16> to vector<32x64xbf16>
    %cst_7 = arith.constant dense<0.000000e+00> : vector<8x64xf32>
    %6 = tpu.matmul %0, %5, %cst_7 {dimension_numbers = #tpu.dot_dimension_numbers<[1], [0], [0], [1], [0, 0, 1, 1], [], []>} : vector<8x32xbf16>, vector<32x64xbf16>, vector<8x64xf32> -> vector<8x64xf32>
    %7 = arith.negf %3 : vector<8x64xf32>
    %8 = math.exp %7 : vector<8x64xf32>
    %cst_8 = arith.constant 1.000000e+00 : f32
    %9 = vector.broadcast %cst_8 : f32 to vector<8x64xf32>
    %10 = arith.addf %9, %8 : vector<8x64xf32>
    %11 = arith.divf %9, %10 : vector<8x64xf32>
    %12 = arith.mulf %3, %11 : vector<8x64xf32>
    %13 = arith.mulf %12, %6 : vector<8x64xf32>
    %14 = arith.truncf %13 : vector<8x64xf32> to vector<8x64xbf16>
    %c0_9 = arith.constant 0 : index
    %c0_10 = arith.constant 0 : index
    %c0_11 = arith.constant 0 : index
    %15 = vector.load %arg5[%c0_9, %c0_10, %c0_11] : memref<1x64x32xbf16, #tpu.memory_space<vmem>>, vector<1x64x32xbf16>
    %16 = vector.shape_cast %15 : vector<1x64x32xbf16> to vector<64x32xbf16>
    %cst_12 = arith.constant dense<0.000000e+00> : vector<8x32xf32>
    %17 = tpu.matmul %14, %16, %cst_12 {dimension_numbers = #tpu.dot_dimension_numbers<[1], [0], [0], [1], [0, 0, 1, 1], [], []>} : vector<8x64xbf16>, vector<64x32xbf16>, vector<8x32xf32> -> vector<8x32xf32>
    %18 = arith.truncf %17 : vector<8x32xf32> to vector<8x32xbf16>
    %c0_13 = arith.constant 0 : index
    %c0_14 = arith.constant 0 : index
    %19 = vector.load %arg6[%c0_13, %c0_14] : memref<8x32xbf16, #tpu.memory_space<vmem>>, vector<8x32xbf16>
    tpu.vector_store %arg6[%c0_13, %c0_14], %18 {strides = array<i32>} : memref<8x32xbf16, #tpu.memory_space<vmem>>, vector<8x32xbf16>,
    return
  }
  func.func @transform_0(%arg0: i32, %arg1: memref<7xi32, #tpu.memory_space<smem>>) -> (i32, i32) {
    %c0_i32 = arith.constant 0 : i32
    %c0_i32_0 = arith.constant 0 : i32
    return %arg0, %c0_i32 : i32, i32
  }
  func.func @transform_1(%arg0: i32, %arg1: memref<7xi32, #tpu.memory_space<smem>>) -> (i32, i32, i32) {
    %0 = arith.index_cast %arg0 : i32 to index
    %1 = memref.load %arg1[%0] : memref<7xi32, #tpu.memory_space<smem>>
    %c0_i32 = arith.constant 0 : i32
    %c0_i32_0 = arith.constant 0 : i32
    %c0_i32_1 = arith.constant 0 : i32
    return %1, %c0_i32, %c0_i32_0 : i32, i32, i32
  }
  func.func @transform_2(%arg0: i32, %arg1: memref<7xi32, #tpu.memory_space<smem>>) -> (i32, i32, i32) {
    %0 = arith.index_cast %arg0 : i32 to index
    %1 = memref.load %arg1[%0] : memref<7xi32, #tpu.memory_space<smem>>
    %c0_i32 = arith.constant 0 : i32
    %c0_i32_0 = arith.constant 0 : i32
    %c0_i32_1 = arith.constant 0 : i32
    return %1, %c0_i32, %c0_i32_0 : i32, i32, i32
  }
  func.func @transform_3(%arg0: i32, %arg1: memref<7xi32, #tpu.memory_space<smem>>) -> (i32, i32, i32) {
    %0 = arith.index_cast %arg0 : i32 to index
    %1 = memref.load %arg1[%0] : memref<7xi32, #tpu.memory_space<smem>>
    %c0_i32 = arith.constant 0 : i32
    %c0_i32_0 = arith.constant 0 : i32
    %c0_i32_1 = arith.constant 0 : i32
    return %1, %c0_i32, %c0_i32_0 : i32, i32, i32
  }
  func.func @transform_4(%arg0: i32, %arg1: memref<7xi32, #tpu.memory_space<smem>>) -> (i32, i32) {
    %c0_i32 = arith.constant 0 : i32
    %c0_i32_0 = arith.constant 0 : i32
    return %arg0, %c0_i32 : i32, i32
  }
}

</mosaic_0001>

<llo_original>
// kernel: tpu_custom_call.1
$region0: #{tpu_custom_call.1}
  #allocation0 [shape = 'u32[]', space=smem, size = 0x4, offset = 0x4, fixed_abs, tag = 'smem constant byte address 0x4 - core index']
  #allocation1 [shape = 'u32[72,128]{1,0:T(1,128)}', space=vmem, size = 0x9000, scoped, tag = 'internal scratch']
  #allocation2 [shape = 's32[1]{0}', space=sflag, size = 0x4, scoped, tag = 'scoped memory for tpu_custom_call.1']
  #allocation3 [shape = 'u8[512]{0}', space=smem, size = 0x200, scoped, tag = 'prefetched SMEM operand 0']
  %s0 = inlined_call_operand.vmem [shape: s32[7], index: 0, kind: input, shape index: {}]
  %s1 = inlined_call_operand.vmem [shape: bf16[56,32], index: 1, kind: input, shape index: {}]
  %s2 = inlined_call_operand.vmem [shape: bf16[4,32,64], index: 2, kind: input, shape index: {}]
  %s3 = inlined_call_operand.vmem [shape: bf16[4,32,64], index: 3, kind: input, shape index: {}]
  %s4 = inlined_call_operand.vmem [shape: bf16[4,64,32], index: 4, kind: input, shape index: {}]
  %s5 = inlined_call_operand.vmem [shape: bf16[56,32], index: 5, kind: output, shape index: {}]
  %s6 = sld [smem:[#allocation0]]
  $region49: #{tpu_custom_call.1} parent=0
    _
  %s8 = ssub.s32 1, %s6
  %s9 = scalar_select 0, %s8, %s6
  %s11 = sshll.u32 %s0, 4
  %s12 = int_to_ptr.vmem [resolvable:$true] %s11
  %14 = dma.vmem_to_smem %s12, 16, [#allocation3], [#allocation2]
  %16 = dma.done [#allocation2], 16
  %17 = sfence
  loop: start=0, step=1, limit=9
  $region2: #{tpu_custom_call.1} parent=0 // loop_pre_header
    _
  $region3: #{tpu_custom_call.1} parent=0 // loop_header
    %s19 = sphi 0, %s23
    %p20 = scmp.ge.s32.totalorder %s19, 9
    %s29 = sphi 0, %s31
    %s32 = sphi 0, %s29
    %s33 = sphi 0, %s32
    %s49 = sphi 0, %s33
    %s57 = sphi 0, %s59
    %s60 = sphi 0, %s57
    %s61 = sphi 0, %s60
    %s77 = sphi 0, %s61
    %s85 = sphi 0, %s87
    %s88 = sphi 0, %s85
    %s89 = sphi 0, %s88
    %s105 = sphi 0, %s89
    %s113 = sphi 0, %s115
    %s116 = sphi 0, %s113
    %s117 = sphi 0, %s116
    %s133 = sphi 0, %s117
    %s139 = sphi 0, %s141
    %s142 = sphi 0, %s139
    %s143 = sphi 0, %s142
    %s159 = sphi 0, %s143
  $region4: #{tpu_custom_call.1} parent=0 // loop_header_branch
    %22 = sbr.rel (%p20) target = $region8
  $region5: #{tpu_custom_call.1} parent=0 // loop_body
    %s24 = ssub.s32 %s19, 1
    %s25 = ssub.s32 %s19, 2
    %s26 = sadd.s32 %s19, 1
    %s27 = ssub.s32 %s19, %s26
    %p28 = scmp.eq.s32.totalorder %s27, 0
    %s30 = sadd.s32 %s29, 1
    %s31 = scalar_select %p28, %s29, %s30
    %p34 = pneg %p28
    %p35 = scmp.eq.s32.totalorder %s19, 6
    %p36 = por %p34, %p35
    %p37 = scmp.ne.s32.totalorder %s29, %s32
    %p38 = scmp.eq.s32.totalorder %s19, 0
    %p39 = por %p37, %p38
    %p40 = scmp.ne.s32.totalorder %s29, %s32
    %p41 = scmp.eq.s32.totalorder %s24, 6
    %p42 = por %p40, %p41
    %p43 = scmp.ne.s32.totalorder %s32, %s33
    %p44 = scmp.eq.s32.totalorder %s24, 0
    %p45 = por %p43, %p44
    %p46 = scmp.ne.s32.totalorder %s32, %s33
    %p47 = scmp.eq.s32.totalorder %s25, 6
    %p48 = por %p46, %p47
    %p50 = scmp.ne.s32.totalorder %s33, %s49
    %p51 = scmp.eq.s32.totalorder %s25, 0
    %p52 = por %p50, %p51
    %s53 = sld [smem:[#allocation3 + %s19]]
    %s54 = sld [smem:[#allocation3 + %s26]]
    %s55 = ssub.s32 %s53, %s54
    %p56 = scmp.eq.s32.totalorder %s55, 0
    %s58 = sadd.s32 %s57, 1
    %s59 = scalar_select %p56, %s57, %s58
    %p62 = pneg %p56
    %p63 = scmp.eq.s32.totalorder %s19, 6
    %p64 = por %p62, %p63
    %p65 = scmp.ne.s32.totalorder %s57, %s60
    %p66 = scmp.eq.s32.totalorder %s19, 0
    %p67 = por %p65, %p66
    %p68 = scmp.ne.s32.totalorder %s57, %s60
    %p69 = scmp.eq.s32.totalorder %s24, 6
    %p70 = por %p68, %p69
    %p71 = scmp.ne.s32.totalorder %s60, %s61
    %p72 = scmp.eq.s32.totalorder %s24, 0
    %p73 = por %p71, %p72
    %p74 = scmp.ne.s32.totalorder %s60, %s61
    %p75 = scmp.eq.s32.totalorder %s25, 6
    %p76 = por %p74, %p75
    %p78 = scmp.ne.s32.totalorder %s61, %s77
    %p79 = scmp.eq.s32.totalorder %s25, 0
    %p80 = por %p78, %p79
    %s81 = sld [smem:[#allocation3 + %s19]]
    %s82 = sld [smem:[#allocation3 + %s26]]
    %s83 = ssub.s32 %s81, %s82
    %p84 = scmp.eq.s32.totalorder %s83, 0
    %s86 = sadd.s32 %s85, 1
    %s87 = scalar_select %p84, %s85, %s86
    %p90 = pneg %p84
    %p91 = scmp.eq.s32.totalorder %s19, 6
    %p92 = por %p90, %p91
    %p93 = scmp.ne.s32.totalorder %s85, %s88
    %p94 = scmp.eq.s32.totalorder %s19, 0
    %p95 = por %p93, %p94
    %p96 = scmp.ne.s32.totalorder %s85, %s88
    %p97 = scmp.eq.s32.totalorder %s24, 6
    %p98 = por %p96, %p97
    %p99 = scmp.ne.s32.totalorder %s88, %s89
    %p100 = scmp.eq.s32.totalorder %s24, 0
    %p101 = por %p99, %p100
    %p102 = scmp.ne.s32.totalorder %s88, %s89
    %p103 = scmp.eq.s32.totalorder %s25, 6
    %p104 = por %p102, %p103
    %p106 = scmp.ne.s32.totalorder %s89, %s105
    %p107 = scmp.eq.s32.totalorder %s25, 0
    %p108 = por %p106, %p107
    %s109 = sld [smem:[#allocation3 + %s19]]
    %s110 = sld [smem:[#allocation3 + %s26]]
    %s111 = ssub.s32 %s109, %s110
    %p112 = scmp.eq.s32.totalorder %s111, 0
    %s114 = sadd.s32 %s113, 1
    %s115 = scalar_select %p112, %s113, %s114
    %p118 = pneg %p112
    %p119 = scmp.eq.s32.totalorder %s19, 6
    %p120 = por %p118, %p119
    %p121 = scmp.ne.s32.totalorder %s113, %s116
    %p122 = scmp.eq.s32.totalorder %s19, 0
    %p123 = por %p121, %p122
    %p124 = scmp.ne.s32.totalorder %s113, %s116
    %p125 = scmp.eq.s32.totalorder %s24, 6
    %p126 = por %p124, %p125
    %p127 = scmp.ne.s32.totalorder %s116, %s117
    %p128 = scmp.eq.s32.totalorder %s24, 0
    %p129 = por %p127, %p128
    %p130 = scmp.ne.s32.totalorder %s116, %s117
    %p131 = scmp.eq.s32.totalorder %s25, 6
    %p132 = por %p130, %p131
    %p134 = scmp.ne.s32.totalorder %s117, %s133
    %p135 = scmp.eq.s32.totalorder %s25, 0
    %p136 = por %p134, %p135
    %s137 = ssub.s32 %s19, %s26
    %p138 = scmp.eq.s32.totalorder %s137, 0
    %s140 = sadd.s32 %s139, 1
    %s141 = scalar_select %p138, %s139, %s140
    %p144 = pneg %p138
    %p145 = scmp.eq.s32.totalorder %s19, 6
    %p146 = por %p144, %p145
    %p147 = scmp.ne.s32.totalorder %s139, %s142
    %p148 = scmp.eq.s32.totalorder %s19, 0
    %p149 = por %p147, %p148
    %p150 = scmp.ne.s32.totalorder %s139, %s142
    %p151 = scmp.eq.s32.totalorder %s24, 6
    %p152 = por %p150, %p151
    %p153 = scmp.ne.s32.totalorder %s142, %s143
    %p154 = scmp.eq.s32.totalorder %s24, 0
    %p155 = por %p153, %p154
    %p156 = scmp.ne.s32.totalorder %s142, %s143
    %p157 = scmp.eq.s32.totalorder %s25, 6
    %p158 = por %p156, %p157
    %p160 = scmp.ne.s32.totalorder %s143, %s159
    %p161 = scmp.eq.s32.totalorder %s25, 0
    %p162 = por %p160, %p161
    %p163 = scmp.le.s32.totalorder 1, %s19
    %p164 = scmp.lt.s32.totalorder %s19, 8
    %p165 = pnand %p163, %p164
    %p166 = pneg %p165
    // Predicated region
    $region9: #{tpu_custom_call.1} parent=5 // pred_check
      _
    $region10: #{tpu_custom_call.1} parent=5 // pred_check_branch
      %168 = sbr.rel (%p165) target = $region12
    $region11: #{tpu_custom_call.1} parent=5 // pred_region
      %s169 = ssub.s32 %s19, 1
    $region12: #{tpu_custom_call.1} parent=5 // pred_fallthru
      _
    %p170 = scmp.lt.s32.totalorder %s19, 7
    // Predicated region
    $region13: #{tpu_custom_call.1} parent=5 // pred_check
      %p171 = pneg %p170
    $region14: #{tpu_custom_call.1} parent=5 // pred_check_branch
      %173 = sbr.rel (%p171) target = $region16
    $region15: #{tpu_custom_call.1} parent=5 // pred_region
      // Predicated region
      $region17: #{tpu_custom_call.1} parent=15 // pred_check
        %p174 = pneg %p39
      $region18: #{tpu_custom_call.1} parent=15 // pred_check_branch
        %176 = sbr.rel (%p174) target = $region20
      $region19: #{tpu_custom_call.1} parent=15 // pred_region
        %p177 = scmp.lt.s32.totalorder %s19, 6
        %s178 = scalar_select %p177, %s19, 6
        %s179 = smul.addr %s178, 4
        %s180 = scalar_lea.vmem %s1, %s179
      $region20: #{tpu_custom_call.1} parent=15 // pred_fallthru
        _
      // Predicated region
      $region21: #{tpu_custom_call.1} parent=15 // pred_check
        %p181 = pneg %p67
      $region22: #{tpu_custom_call.1} parent=15 // pred_check_branch
        %183 = sbr.rel (%p181) target = $region24
      $region23: #{tpu_custom_call.1} parent=15 // pred_region
        %s184 = sld [smem:[#allocation3 + %s19]]
        %p185 = scmp.lt.s32.totalorder %s184, 3
        %s186 = scalar_select %p185, %s184, 3
        %s187 = smul.addr %s186, 4
        %s188 = smul.addr %s187, 4
        %s189 = scalar_lea.vmem %s2, %s188
        %s190 = sld [smem:[#allocation3 + %s19]]
      $region24: #{tpu_custom_call.1} parent=15 // pred_fallthru
        _
      // Predicated region
      $region25: #{tpu_custom_call.1} parent=15 // pred_check
        %p191 = pneg %p95
      $region26: #{tpu_custom_call.1} parent=15 // pred_check_branch
        %193 = sbr.rel (%p191) target = $region28
      $region27: #{tpu_custom_call.1} parent=15 // pred_region
        %s194 = sld [smem:[#allocation3 + %s19]]
        %p195 = scmp.lt.s32.totalorder %s194, 3
        %s196 = scalar_select %p195, %s194, 3
        %s197 = smul.addr %s196, 4
        %s198 = smul.addr %s197, 4
        %s199 = scalar_lea.vmem %s3, %s198
        %s200 = sld [smem:[#allocation3 + %s19]]
      $region28: #{tpu_custom_call.1} parent=15 // pred_fallthru
        _
      // Predicated region
      $region29: #{tpu_custom_call.1} parent=15 // pred_check
        %p201 = pneg %p123
      $region30: #{tpu_custom_call.1} parent=15 // pred_check_branch
        %203 = sbr.rel (%p201) target = $region32
      $region31: #{tpu_custom_call.1} parent=15 // pred_region
        %s204 = sld [smem:[#allocation3 + %s19]]
        %p205 = scmp.lt.s32.totalorder %s204, 3
        %s206 = scalar_select %p205, %s204, 3
        %s207 = smul.addr %s206, 8
        %s208 = smul.addr %s207, 4
        %s209 = scalar_lea.vmem %s4, %s208
        %s210 = sld [smem:[#allocation3 + %s19]]
      $region32: #{tpu_custom_call.1} parent=15 // pred_fallthru
        _
    $region16: #{tpu_custom_call.1} parent=5 // pred_fallthru
      _
    %p211 = scmp.le.s32.totalorder 1, %s19
    %p212 = scmp.lt.s32.totalorder %s19, 8
    %p213 = pnand %p211, %p212
    %p214 = pneg %p213
    // Predicated region
    $region33: #{tpu_custom_call.1} parent=5 // pred_check
      _
    $region34: #{tpu_custom_call.1} parent=5 // pred_check_branch
      %216 = sbr.rel (%p213) target = $region36
    $region35: #{tpu_custom_call.1} parent=5 // pred_region
      %s217 = ssub.s32 %s19, 1
      %p218 = scmp.lt.s32.totalorder %s24, 6
      %s219 = scalar_select %p218, %s24, 6
      %s220 = smul.addr %s219, 4
      %s221 = scalar_lea.vmem %s1, %s220
      %p222 = pneg %p45
      %p223 = pneg %p42
      %s224 = sld [smem:[#allocation3 + %s24]]
      %p225 = scmp.lt.s32.totalorder %s224, 3
      %s226 = scalar_select %p225, %s224, 3
      %s227 = smul.addr %s226, 4
      %s228 = smul.addr %s227, 4
      %s229 = scalar_lea.vmem %s2, %s228
      %p230 = pneg %p73
      %p231 = pneg %p70
      %s232 = sld [smem:[#allocation3 + %s24]]
      %p233 = scmp.lt.s32.totalorder %s232, 3
      %s234 = scalar_select %p233, %s232, 3
      %s235 = smul.addr %s234, 4
      %s236 = smul.addr %s235, 4
      %s237 = scalar_lea.vmem %s3, %s236
      %p238 = pneg %p101
      %p239 = pneg %p98
      %s240 = sld [smem:[#allocation3 + %s24]]
      %p241 = scmp.lt.s32.totalorder %s240, 3
      %s242 = scalar_select %p241, %s240, 3
      %s243 = smul.addr %s242, 8
      %s244 = smul.addr %s243, 4
      %s245 = scalar_lea.vmem %s4, %s244
      %p246 = pneg %p129
      %p247 = pneg %p126
      %p248 = pneg %p155
      %p249 = pneg %p152
      %p250 = scmp.lt.s32.totalorder %s24, 6
      %s251 = scalar_select %p250, %s24, 6
      %s252 = smul.addr %s251, 4
      %s253 = scalar_lea.vmem %s5, %s252
      %p254 = scmp.lt.s32.totalorder %s24, 6
      %s255 = scalar_select %p254, %s24, 6
      %s256 = smul.addr %s255, 4
      %s257 = scalar_lea.vmem %s1, %s256
      %s258 = sld [smem:[#allocation3 + %s24]]
      %p259 = scmp.lt.s32.totalorder %s258, 3
      %s260 = scalar_select %p259, %s258, 3
      %s261 = smul.addr %s260, 4
      %s262 = smul.addr %s261, 4
      %s263 = scalar_lea.vmem %s2, %s262
      %s264 = sld [smem:[#allocation3 + %s24]]
      %s265 = sld [smem:[#allocation3 + %s24]]
      %p266 = scmp.lt.s32.totalorder %s265, 3
      %s267 = scalar_select %p266, %s265, 3
      %s268 = smul.addr %s267, 4
      %s269 = smul.addr %s268, 4
      %s270 = scalar_lea.vmem %s3, %s269
      %s271 = sld [smem:[#allocation3 + %s24]]
      %s272 = sld [smem:[#allocation3 + %s24]]
      %p273 = scmp.lt.s32.totalorder %s272, 3
      %s274 = scalar_select %p273, %s272, 3
      %s275 = smul.addr %s274, 8
      %s276 = smul.addr %s275, 4
      %s277 = scalar_lea.vmem %s4, %s276
      %s278 = sld [smem:[#allocation3 + %s24]]
      %p279 = scmp.lt.s32.totalorder %s24, 6
      %s280 = scalar_select %p279, %s24, 6
      %s281 = smul.addr %s280, 4
      %s282 = scalar_lea.vmem %s5, %s281
      %v284 = vld [vmem:[%s257] sm:$0xf]
      %v285 = vld [vmem:[%s263] sm:$0xf]
      %v286 = vld [vmem:[%s263 + $0x4] sm:$0xf]
      %v287 = vld [vmem:[%s263 + $0x8] sm:$0xf]
      %v288 = vld [vmem:[%s263 + $0xc] sm:$0xf]
      %v293 = vunpack.c.l.b16 %v285
      %v294 = vunpack.c.l.b16 %v286
      %v295 = vunpack.c.l.b16 %v287
      %v296 = vunpack.c.l.b16 %v288
      %v297 = vpack.c.b16 %v294, %v293
      %v298 = vpack.c.b16 %v296, %v295
      %vm301 = vcmask 261120
      %v303 = vsel %vm301, %v284, 0
      %305 = vmatpush.bf16.msra.mxu0 0
      %306 = vmatpush.bf16.msra.mxu0 0
      %307 = vmatpush.bf16.msra.mxu0 0
      %308 = vmatpush.bf16.msra.mxu0 0
      %309 = vmatpush.bf16.msra.mxu0 0
      %310 = vmatpush.bf16.msra.mxu0 0
      %311 = vmatpush.bf16.msra.mxu0 %v298
      %312 = vmatpush.bf16.msra.mxu0 %v297
      %313 = vmatmul.bf16.gmra.mxu0 %v303
      %v314 = vpop.f32.mrf.mxu0
      %v315 = vadd.f32 0.0, %v314
      %v316 = vpop.f32.mrf.mxu0
      %317 = vdwg.mxu0
      %v318 = vld [vmem:[%s270] sm:$0xf]
      %v319 = vld [vmem:[%s270 + $0x4] sm:$0xf]
      %v320 = vld [vmem:[%s270 + $0x8] sm:$0xf]
      %v321 = vld [vmem:[%s270 + $0xc] sm:$0xf]
      %v326 = vunpack.c.l.b16 %v318
      %v327 = vunpack.c.l.b16 %v319
      %v328 = vunpack.c.l.b16 %v320
      %v329 = vunpack.c.l.b16 %v321
      %v330 = vpack.c.b16 %v327, %v326
      %v331 = vpack.c.b16 %v329, %v328
      %334 = vmatpush.bf16.msra.mxu0 0
      %335 = vmatpush.bf16.msra.mxu0 0
      %336 = vmatpush.bf16.msra.mxu0 0
      %337 = vmatpush.bf16.msra.mxu0 0
      %338 = vmatpush.bf16.msra.mxu0 0
      %339 = vmatpush.bf16.msra.mxu0 0
      %340 = vmatpush.bf16.msra.mxu0 %v331
      %341 = vmatpush.bf16.msra.mxu0 %v330
      %342 = vmatmul.bf16.gmra.mxu0 %v303
      %v343 = vpop.f32.mrf.mxu0
      %v344 = vadd.f32 0.0, %v343
      %v345 = vpop.f32.mrf.mxu0
      %346 = vdwg.mxu0
      %v347 = vxor.u32 %v315, 2147483648
      %v348 = vmul.f32 %v347, 1.442695
      %v349 = vpow.pop %v348
      %v350 = vadd.f32 %v349, 1.0
      %v351 = vrcp.pop %v350
      %v352 = vmul.f32 %v350, %v351
      %v353 = vsub.f32 1.0, %v352
      %v354 = vmul.f32 %v351, %v353
      %v355 = vadd.f32 %v351, %v354
      %vm356 = vweird.f32 %v350
      %vm357 = vweird.f32 %v351
      %vm358 = vmor %vm356, %vm357
      %v359 = vsel %vm358, %v351, %v355
      %v360 = vand.u32 2147483647, %v350
      %vm361 = vcmp.eq.f32.partialorder %v360, 8.507059e+37
      %v362 = vand.u32 %v350, 2147483648
      %v363 = vor.u32 1.1754944e-38, %v362
      %v364 = vsel %vm361, %v363, %v359
      %v365 = vmul.f32 1.0, %v364
      %v366 = vmul.f32 %v315, %v365
      %v367 = vmul.f32 %v366, %v344
      %v368 = vpack.c.bf16 %v367, %v367
      %v369 = vld [vmem:[%s277] sm:$0xf]
      %v370 = vld [vmem:[%s277 + $0x4] sm:$0xf]
      %v371 = vld [vmem:[%s277 + $0x8] sm:$0xf]
      %v372 = vld [vmem:[%s277 + $0xc] sm:$0xf]
      %v373 = vld [vmem:[%s277 + $0x10] sm:$0xf]
      %v374 = vld [vmem:[%s277 + $0x14] sm:$0xf]
      %v375 = vld [vmem:[%s277 + $0x18] sm:$0xf]
      %v376 = vld [vmem:[%s277 + $0x1c] sm:$0xf]
      %v385 = vunpack.c.l.b16 %v369
      %v386 = vunpack.c.l.b16 %v370
      %v387 = vunpack.c.l.b16 %v371
      %v388 = vunpack.c.l.b16 %v372
      %v389 = vunpack.c.l.b16 %v373
      %v390 = vunpack.c.l.b16 %v374
      %v391 = vunpack.c.l.b16 %v375
      %v392 = vunpack.c.l.b16 %v376
      %v393 = vpack.c.b16 %v386, %v385
      %v394 = vpack.c.b16 %v388, %v387
      %v395 = vpack.c.b16 %v390, %v389
      %v396 = vpack.c.b16 %v392, %v391
      %vm401 = vcmask 523264
      %v403 = vsel %vm401, %v368, 0
      %405 = vmatpush.bf16.msra.mxu0 0
      %406 = vmatpush.bf16.msra.mxu0 0
      %407 = vmatpush.bf16.msra.mxu0 0
      %408 = vmatpush.bf16.msra.mxu0 0
      %409 = vmatpush.bf16.msra.mxu0 %v396
      %410 = vmatpush.bf16.msra.mxu0 %v395
      %411 = vmatpush.bf16.msra.mxu0 %v394
      %412 = vmatpush.bf16.msra.mxu0 %v393
      %413 = vmatmul.bf16.gmra.mxu0 %v403
      %v414 = vpop.f32.mrf.mxu0
      %v415 = vadd.f32 0.0, %v414
      %v416 = vpop.f32.mrf.mxu0
      %417 = vdwg.mxu0
      %v418 = vpack.c.bf16 %v415, %v415
      %vm419 = vcmask 257024
      %420 = vst.msk [vmem:[%s282] sm:$0xf] %vm419, %v418
      %p421 = scmp.lt.s32.totalorder %s24, 6
      %s422 = scalar_select %p421, %s24, 6
      %s423 = smul.addr %s422, 4
      %s424 = scalar_lea.vmem %s5, %s423
      // Predicated region
      $region37: #{tpu_custom_call.1} parent=35 // pred_check
        %p425 = pneg %p152
      $region38: #{tpu_custom_call.1} parent=35 // pred_check_branch
        %427 = sbr.rel (%p425) target = $region40
      $region39: #{tpu_custom_call.1} parent=35 // pred_region
        _
      $region40: #{tpu_custom_call.1} parent=35 // pred_fallthru
        _
    $region36: #{tpu_custom_call.1} parent=5 // pred_fallthru
      _
    %p428 = scmp.le.s32.totalorder 2, %s19
    // Predicated region
    $region41: #{tpu_custom_call.1} parent=5 // pred_check
      %p429 = pneg %p428
    $region42: #{tpu_custom_call.1} parent=5 // pred_check_branch
      %431 = sbr.rel (%p429) target = $region44
    $region43: #{tpu_custom_call.1} parent=5 // pred_region
      %s432 = ssub.s32 %s19, 2
      // Predicated region
      $region45: #{tpu_custom_call.1} parent=43 // pred_check
        %p433 = pneg %p158
      $region46: #{tpu_custom_call.1} parent=43 // pred_check_branch
        %435 = sbr.rel (%p433) target = $region48
      $region47: #{tpu_custom_call.1} parent=43 // pred_region
        %p436 = scmp.lt.s32.totalorder %s25, 6
        %s437 = scalar_select %p436, %s25, 6
        %s438 = smul.addr %s437, 4
        %s439 = scalar_lea.vmem %s5, %s438
      $region48: #{tpu_custom_call.1} parent=43 // pred_fallthru
        _
    $region44: #{tpu_custom_call.1} parent=5 // pred_fallthru
      _
  $region6: #{tpu_custom_call.1} parent=0 // loop_footer
    %s23 = sadd.s32 1, %s19
  $region7: #{tpu_custom_call.1} parent=0 // loop_footer_branch
    %18 = sbr.rel target = $region3
  $region8: #{tpu_custom_call.1} parent=0 // loop_exit
    _

</llo_original>
